<compile_context>
chip_gen: v7x
topology: tpu7x:2x2x1
jax: 0.10.0
libtpu: 0.0.40
codegen_flags: <defaults>
</compile_context>

<pallas_src>
import functools

import jax
import jax.numpy as jnp
from jax.experimental import pallas as pl
from jax.experimental.pallas import tpu as pltpu


NEG_SLOPE = 0.01                 # nn.LeakyReLU default
COMPUTE_DTYPE = jnp.bfloat16     # MXU operand dtype (accumulation stays f32)


def _make_kernel(kh, kw, stride, padding, cin, cout_pad, h, w, ho, wo, bt):
    """Kernel over Bt images: fused reflect-pad + single-dot conv + bias + LeakyReLU."""
    hp, wp = h + 2 * padding, w + 2 * padding
    # Columns of the flat-space matmul: all slices stay within Hp*Wp by construction.
    n_cols = (ho - 1) * stride * wp + (wo - 1) * stride + 1
    hvalid = (ho - 1) * stride + 1
    pad_cols = hvalid * wp - n_cols          # >= kw-1 >= 0; appended zeros are discarded

    def kernel(x_ref, w_ref, b_ref, o_ref):
        # x_ref: (bt, cin, h, w)   unpadded images (NCHW)
        # w_ref: (cout_pad, kh*kw*cin)  lane-dense weight, COMPUTE_DTYPE
        # b_ref: (cout_pad, 1)          f32 bias
        # o_ref: (bt, cout_pad, ho*wo)  lane-dense output
        w_mat = w_ref[...]
        bias = b_ref[...]

        for b in range(bt):                              # images per grid step (unrolled)
            x = x_ref[b]                                 # (cin, h, w)

            # ---- fused reflection pad (halo from width-1 slices; padding < h, w) ----
            if padding > 0:
                left = [x[:, :, padding - q:padding - q + 1] for q in range(padding)]
                right = [x[:, :, w - 2 - q:w - 1 - q] for q in range(padding)]
                x = jnp.concatenate(left + [x] + right, axis=2)      # (cin, h, wp)
                top = [x[:, padding - q:padding - q + 1, :] for q in range(padding)]
                bot = [x[:, h - 2 - q:h - 1 - q, :] for q in range(padding)]
                x = jnp.concatenate(top + [x] + bot, axis=1)         # (cin, hp, wp)

            # ---- lane-flat image; kh*kw shifted operands are pure lane slices ----
            xf = x.reshape(cin, hp * wp)                             # one relayout
            slabs = []
            for i in range(kh):
                for j in range(kw):
                    off = i * wp + j
                    slabs.append(jax.lax.slice(xf, (0, off), (cin, off + n_cols)))
            stacked = jnp.concatenate(slabs, axis=0)                 # (kh*kw*cin, n_cols)

            # ---- single MXU call, f32 accumulation ----
            acc = jnp.dot(w_mat, stacked.astype(w_mat.dtype),
                          preferred_element_type=jnp.float32)        # (cout_pad, n_cols)

            # ---- compact valid output columns (one relayout, not kh*kw) ----
            if pad_cols:
                acc = jnp.concatenate(
                    [acc, jnp.zeros((cout_pad, pad_cols), jnp.float32)], axis=1)
            acc = acc.reshape(cout_pad, hvalid, wp)
            if stride == 1:
                acc = jax.lax.slice(acc, (0, 0, 0), (cout_pad, hvalid, wo))
            else:
                acc = jax.lax.slice(acc, (0, 0, 0),
                                    (cout_pad, hvalid, (wo - 1) * stride + 1),
                                    (1, stride, stride))
            acc = acc.reshape(cout_pad, ho * wo)

            # ---- bias + LeakyReLU (mul+max), lane-dense store ----
            acc = acc + bias
            o_ref[b] = jnp.maximum(acc, NEG_SLOPE * acc).astype(o_ref.dtype)

    return kernel


def _pick_batch_tile(batch, per_image_bytes, budget_bytes=8 * 1024 * 1024):
    """Images per grid step: amortize per-step overhead (v5e/v6e) while keeping
    the parallel grid >= 2 steps for v7x's two TensorCores and fitting VMEM."""
    best = 1
    for bt in range(1, batch + 1):
        if batch % bt:
            continue
        if batch >= 2 and batch // bt < 2:
            continue
        if bt * per_image_bytes > budget_bytes:
            continue
        best = bt
    return best


@functools.partial(jax.jit, static_argnames=("stride", "padding"))
def leaky_relu_conv2d(x, weight, bias, *, stride, padding):
    """x: (B, Cin, H, W) NCHW; weight: (Cout, Cin, kh, kw); bias: (Cout,)."""
    B, Cin, H, W = x.shape
    Cout, _, kh, kw = weight.shape
    assert 0 <= padding < H and padding < W, \
        "ReflectionPad2d requires padding < spatial dims"

    Hp, Wp = H + 2 * padding, W + 2 * padding
    Ho = (Hp - kh) // stride + 1
    Wo = (Wp - kw) // stride + 1

    # Sublane-pad Cout to a multiple of 8; zero weight/bias rows are exact.
    Cout_pad = max(8, ((Cout + 7) // 8) * 8)
    K = kh * kw * Cin

    # Lane-dense weight (Cout_pad, kh*kw*Cin); row order (i, j, c) matches the
    # in-kernel K stacking. Stored in the MXU compute dtype.
    w2 = weight.transpose(0, 2, 3, 1).reshape(Cout, K)
    if Cout_pad != Cout:
        w2 = jnp.pad(w2, ((0, Cout_pad - Cout), (0, 0)))
        bias = jnp.pad(bias, (0, Cout_pad - Cout))
    w2 = w2.astype(COMPUTE_DTYPE)
    b2 = bias.astype(jnp.float32).reshape(Cout_pad, 1)

    # Per-step footprint estimate (f32 upper bound) -> batch tile + vmem limit.
    n_cols = (Ho - 1) * stride * Wp + (Wo - 1) * stride + 1
    per_image = 4 * (Cin * H * W                # input block
                     + Cout_pad * Ho * Wo       # output block
                     + 2 * Cin * Hp * Wp        # padded + flat image
                     + K * n_cols               # stacked operand
                     + 2 * Cout_pad * Hp * Wp)  # acc + compaction temporaries
    bt = _pick_batch_tile(B, per_image)
    grid = (B // bt,)

    weights_bytes = w2.size * w2.dtype.itemsize + b2.size * b2.dtype.itemsize
    need = 2 * bt * per_image + 2 * weights_bytes
    vmem_limit = int(min(max(2 * need, 16 * 1024 * 1024), 64 * 1024 * 1024))

    kernel = _make_kernel(kh, kw, stride, padding, Cin, Cout_pad, H, W, Ho, Wo, bt)

    out = pl.pallas_call(
        kernel,
        out_shape=jax.ShapeDtypeStruct((B, Cout_pad, Ho * Wo), x.dtype),
        grid_spec=pltpu.PrefetchScalarGridSpec(
            num_scalar_prefetch=0,
            grid=grid,
            in_specs=[
                pl.BlockSpec((bt, Cin, H, W), lambda g: (g, 0, 0, 0)),
                pl.BlockSpec((Cout_pad, K), lambda g: (0, 0)),
                pl.BlockSpec((Cout_pad, 1), lambda g: (0, 0)),
            ],
            out_specs=pl.BlockSpec((bt, Cout_pad, Ho * Wo), lambda g: (g, 0, 0)),
        ),
        compiler_params=pltpu.CompilerParams(
            dimension_semantics=("parallel",),
            vmem_limit_bytes=vmem_limit),
    )(x, w2, b2)

    # Free contiguous reshape back to NCHW; slice off padded Cout rows.
    out = out[:, :Cout].reshape(B, Cout, Ho, Wo)
    return out


def init_params(key, n_in, n_out, kernel_size):
    """Deterministic init matching nn.Conv2d param shapes (kaiming-uniform-ish)."""
    kw_, kb = jax.random.split(key)
    fan_in = n_in * kernel_size * kernel_size
    bound = 1.0 / jnp.sqrt(fan_in)
    weight = jax.random.uniform(
        kw_, (n_out, n_in, kernel_size, kernel_size),
        minval=-bound, maxval=bound, dtype=jnp.float32)
    bias = jax.random.uniform(kb, (n_out,), minval=-bound, maxval=bound,
                              dtype=jnp.float32)
    return weight, bias


def _reference(x, weight, bias, *, stride, padding):
    """Pure-JAX reference: reflect pad -> conv -> leaky relu."""
    if padding > 0:
        x = jnp.pad(x, ((0, 0), (0, 0), (padding, padding), (padding, padding)),
                    mode="reflect")
    y = jax.lax.conv_general_dilated(
        x, weight, window_strides=(stride, stride), padding="VALID",
        dimension_numbers=("NCHW", "OIHW", "NCHW"))
    y = y + bias.reshape(1, -1, 1, 1)
    return jnp.where(y >= 0, y, NEG_SLOPE * y)


if __name__ == "__main__":
    key = jax.random.PRNGKey(0)
    kx, kp = jax.random.split(key)

    B, n_in, H, W = 2, 4, 16, 16
    n_out, ksize, stride, padding = 8, 3, 1, 1

    x = jax.random.normal(kx, (B, n_in, H, W), dtype=jnp.float32)
    weight, bias = init_params(kp, n_in, n_out, ksize)

    out = leaky_relu_conv2d(x, weight, bias, stride=stride, padding=padding)
    out = jax.block_until_ready(out)

    ref = _reference(x, weight, bias, stride=stride, padding=padding)
    assert out.shape == ref.shape == (B, n_out, H, W)
    # bf16 MXU operands (f32 accumulation) -> relaxed tolerance vs the f32 reference.
    err = float(jnp.max(jnp.abs(out - ref)))
    assert jnp.allclose(out, ref, atol=2e-2, rtol=2e-2), err

    print("KERNEL_OK")
</pallas_src>

<mosaic_0001>
module attributes {stable_mosaic.version = 11 : i64} {
  func.func @kernel(%arg0: i32, %arg1: memref<1x4x16x16xf32, #tpu.memory_space<vmem>>, %arg2: memref<8x36xbf16, #tpu.memory_space<vmem>>, %arg3: memref<8x1xf32, #tpu.memory_space<vmem>>, %arg4: memref<1x8x256xf32, #tpu.memory_space<vmem>>) attributes {dimension_semantics = [#tpu.dimension_semantics<parallel>], iteration_bounds = array<i64: 2>, scalar_prefetch = 0 : i64, scratch_operands = 0 : i64, tpu.core_type = #tpu.core_type<tc>, window_params = [{transform_indices = @transform_0, window_bounds = array<i64: 1, 4, 16, 16>}, {pipeline_mode = #tpu.pipeline_mode<synchronous>, transform_indices = @transform_1, window_bounds = array<i64: 8, 36>}, {pipeline_mode = #tpu.pipeline_mode<synchronous>, transform_indices = @transform_2, window_bounds = array<i64: 8, 1>}, {transform_indices = @transform_3, window_bounds = array<i64: 1, 8, 256>}]} {
    %c0 = arith.constant 0 : index
    %c0_0 = arith.constant 0 : index
    %0 = vector.load %arg2[%c0, %c0_0] : memref<8x36xbf16, #tpu.memory_space<vmem>>, vector<8x36xbf16>
    %c0_1 = arith.constant 0 : index
    %c0_2 = arith.constant 0 : index
    %1 = vector.load %arg3[%c0_1, %c0_2] : memref<8x1xf32, #tpu.memory_space<vmem>>, vector<8x1xf32>
    %c0_3 = arith.constant 0 : index
    %c0_4 = arith.constant 0 : index
    %c0_5 = arith.constant 0 : index
    %c0_6 = arith.constant 0 : index
    %2 = vector.load %arg1[%c0_3, %c0_4, %c0_5, %c0_6] : memref<1x4x16x16xf32, #tpu.memory_space<vmem>>, vector<1x4x16x16xf32>
    %3 = vector.shape_cast %2 : vector<1x4x16x16xf32> to vector<4x16x16xf32>
    %4 = vector.extract_strided_slice %3 {offsets = [0, 0, 1], sizes = [4, 16, 1], strides = [1, 1, 1]} : vector<4x16x16xf32> to vector<4x16x1xf32>
    %5 = vector.extract_strided_slice %3 {offsets = [0, 0, 14], sizes = [4, 16, 1], strides = [1, 1, 1]} : vector<4x16x16xf32> to vector<4x16x1xf32>
    %6 = tpu.concatenate %4, %3, %5 in 2 : vector<4x16x1xf32>, vector<4x16x16xf32>, vector<4x16x1xf32> -> vector<4x16x18xf32>
    %7 = vector.extract_strided_slice %6 {offsets = [0, 1, 0], sizes = [4, 1, 18], strides = [1, 1, 1]} : vector<4x16x18xf32> to vector<4x1x18xf32>
    %8 = vector.extract_strided_slice %6 {offsets = [0, 14, 0], sizes = [4, 1, 18], strides = [1, 1, 1]} : vector<4x16x18xf32> to vector<4x1x18xf32>
    %9 = tpu.concatenate %7, %6, %8 in 1 : vector<4x1x18xf32>, vector<4x16x18xf32>, vector<4x1x18xf32> -> vector<4x18x18xf32>
    %10 = vector.shape_cast %9 : vector<4x18x18xf32> to vector<4x324xf32>
    %11 = vector.extract_strided_slice %10 {offsets = [0, 0], sizes = [4, 286], strides = [1, 1]} : vector<4x324xf32> to vector<4x286xf32>
    %12 = vector.extract_strided_slice %10 {offsets = [0, 1], sizes = [4, 286], strides = [1, 1]} : vector<4x324xf32> to vector<4x286xf32>
    %13 = vector.extract_strided_slice %10 {offsets = [0, 2], sizes = [4, 286], strides = [1, 1]} : vector<4x324xf32> to vector<4x286xf32>
    %14 = vector.extract_strided_slice %10 {offsets = [0, 18], sizes = [4, 286], strides = [1, 1]} : vector<4x324xf32> to vector<4x286xf32>
    %15 = vector.extract_strided_slice %10 {offsets = [0, 19], sizes = [4, 286], strides = [1, 1]} : vector<4x324xf32> to vector<4x286xf32>
    %16 = vector.extract_strided_slice %10 {offsets = [0, 20], sizes = [4, 286], strides = [1, 1]} : vector<4x324xf32> to vector<4x286xf32>
    %17 = vector.extract_strided_slice %10 {offsets = [0, 36], sizes = [4, 286], strides = [1, 1]} : vector<4x324xf32> to vector<4x286xf32>
    %18 = vector.extract_strided_slice %10 {offsets = [0, 37], sizes = [4, 286], strides = [1, 1]} : vector<4x324xf32> to vector<4x286xf32>
    %19 = vector.extract_strided_slice %10 {offsets = [0, 38], sizes = [4, 286], strides = [1, 1]} : vector<4x324xf32> to vector<4x286xf32>
    %20 = tpu.concatenate %11, %12, %13, %14, %15, %16, %17, %18, %19 in 0 : vector<4x286xf32>, vector<4x286xf32>, vector<4x286xf32>, vector<4x286xf32>, vector<4x286xf32>, vector<4x286xf32>, vector<4x286xf32>, vector<4x286xf32>, vector<4x286xf32> -> vector<36x286xf32>
    %21 = arith.truncf %20 : vector<36x286xf32> to vector<36x286xbf16>
    %cst = arith.constant dense<0.000000e+00> : vector<8x286xf32>
    %22 = tpu.matmul %0, %21, %cst {dimension_numbers = #tpu.dot_dimension_numbers<[1], [0], [0], [1], [0, 0, 1, 1], [], []>} : vector<8x36xbf16>, vector<36x286xbf16>, vector<8x286xf32> -> vector<8x286xf32>
    %cst_7 = arith.constant 0.000000e+00 : f32
    %23 = vector.broadcast %cst_7 : f32 to vector<8x2xf32>
    %24 = tpu.concatenate %22, %23 in 1 : vector<8x286xf32>, vector<8x2xf32> -> vector<8x288xf32>
    %25 = vector.shape_cast %24 : vector<8x288xf32> to vector<8x16x18xf32>
    %26 = vector.extract_strided_slice %25 {offsets = [0, 0, 0], sizes = [8, 16, 16], strides = [1, 1, 1]} : vector<8x16x18xf32> to vector<8x16x16xf32>
    %27 = vector.shape_cast %26 : vector<8x16x16xf32> to vector<8x256xf32>
    %28 = vector.broadcast %1 : vector<8x1xf32> to vector<8x256xf32>
    %29 = arith.addf %27, %28 : vector<8x256xf32>
    %cst_8 = arith.constant 0.00999999977 : f32
    %30 = vector.broadcast %cst_8 : f32 to vector<8x256xf32>
    %31 = arith.mulf %30, %29 : vector<8x256xf32>
    %32 = arith.maximumf %29, %31 : vector<8x256xf32>
    %c0_9 = arith.constant 0 : index
    %c0_10 = arith.constant 0 : index
    %c0_11 = arith.constant 0 : index
    %33 = vector.load %arg4[%c0_9, %c0_10, %c0_11] : memref<1x8x256xf32, #tpu.memory_space<vmem>>, vector<1x8x256xf32>
    %34 = vector.shape_cast %33 : vector<1x8x256xf32> to vector<8x256xf32>
    %35 = vector.shape_cast %32 : vector<8x256xf32> to vector<1x8x256xf32>
    tpu.vector_store %arg4[%c0_9, %c0_10, %c0_11], %35 {strides = array<i32>} : memref<1x8x256xf32, #tpu.memory_space<vmem>>, vector<1x8x256xf32>,
    return
  }
  func.func @transform_0(%arg0: i32) -> (i32, i32, i32, i32) {
    %c0_i32 = arith.constant 0 : i32
    %c0_i32_0 = arith.constant 0 : i32
    %c0_i32_1 = arith.constant 0 : i32
    %c0_i32_2 = arith.constant 0 : i32
    return %arg0, %c0_i32, %c0_i32_0, %c0_i32_1 : i32, i32, i32, i32
  }
  func.func @transform_1(%arg0: i32) -> (i32, i32) {
    %c0_i32 = arith.constant 0 : i32
    %c0_i32_0 = arith.constant 0 : i32
    %c0_i32_1 = arith.constant 0 : i32
    return %c0_i32, %c0_i32_0 : i32, i32
  }
  func.func @transform_2(%arg0: i32) -> (i32, i32) {
    %c0_i32 = arith.constant 0 : i32
    %c0_i32_0 = arith.constant 0 : i32
    %c0_i32_1 = arith.constant 0 : i32
    return %c0_i32, %c0_i32_0 : i32, i32
  }
  func.func @transform_3(%arg0: i32) -> (i32, i32, i32) {
    %c0_i32 = arith.constant 0 : i32
    %c0_i32_0 = arith.constant 0 : i32
    %c0_i32_1 = arith.constant 0 : i32
    return %arg0, %c0_i32, %c0_i32_0 : i32, i32, i32
  }
}

</mosaic_0001>

<llo_original>
// kernel: leaky_relu_conv2d.1
$region0: #{leaky_relu_conv2d.1}
  #allocation0 [shape = 'u32[]', space=smem, size = 0x4, offset = 0x4, fixed_abs, tag = 'smem constant byte address 0x4 - core index']
  #allocation1 [shape = 'u32[144,128]{1,0:T(1,128)}', space=vmem, size = 0x12000, scoped, tag = 'internal scratch']
  %s0 = inlined_call_operand.vmem [shape: f32[2,4,16,16], index: 0, kind: input, shape index: {}]
  %s1 = inlined_call_operand.vmem [shape: bf16[8,36], index: 1, kind: input, shape index: {}]
  %s2 = inlined_call_operand.vmem [shape: f32[8,1], index: 2, kind: input, shape index: {}]
  %s3 = inlined_call_operand.vmem [shape: f32[2,8,256], index: 3, kind: output, shape index: {}]
  %s4 = sld [smem:[#allocation0]]
  $region45: #{leaky_relu_conv2d.1} parent=0
    _
  %s6 = ssub.s32 1, %s4
  %s7 = scalar_select 0, %s6, %s4
  loop: start=0, step=1, limit=4
  $region2: #{leaky_relu_conv2d.1} parent=0 // loop_pre_header
    _
  $region3: #{leaky_relu_conv2d.1} parent=0 // loop_header
    %s9 = sphi 0, %s13
    %p10 = scmp.ge.s32.totalorder %s9, 4
    %s19 = sphi 0, %s21
    %s22 = sphi 0, %s19
    %s23 = sphi 0, %s22
    %s39 = sphi 0, %s23
    %s43 = sphi 0, %s43
    %s45 = sphi 0, %s43
    %s46 = sphi 0, %s45
    %s60 = sphi 0, %s46
    %s64 = sphi 0, %s64
    %s66 = sphi 0, %s64
    %s67 = sphi 0, %s66
    %s81 = sphi 0, %s67
    %s87 = sphi 0, %s89
    %s90 = sphi 0, %s87
    %s91 = sphi 0, %s90
    %s107 = sphi 0, %s91
  $region4: #{leaky_relu_conv2d.1} parent=0 // loop_header_branch
    %12 = sbr.rel (%p10) target = $region8
  $region5: #{leaky_relu_conv2d.1} parent=0 // loop_body
    %s14 = ssub.s32 %s9, 1
    %s15 = ssub.s32 %s9, 2
    %s16 = sadd.s32 %s9, 1
    %s17 = ssub.s32 %s9, %s16
    %p18 = scmp.eq.s32.totalorder %s17, 0
    %s20 = sadd.s32 %s19, 1
    %s21 = scalar_select %p18, %s19, %s20
    %p24 = pneg %p18
    %p25 = scmp.eq.s32.totalorder %s9, 1
    %p26 = por %p24, %p25
    %p27 = scmp.ne.s32.totalorder %s19, %s22
    %p28 = scmp.eq.s32.totalorder %s9, 0
    %p29 = por %p27, %p28
    %p30 = scmp.ne.s32.totalorder %s19, %s22
    %p31 = scmp.eq.s32.totalorder %s14, 1
    %p32 = por %p30, %p31
    %p33 = scmp.ne.s32.totalorder %s22, %s23
    %p34 = scmp.eq.s32.totalorder %s14, 0
    %p35 = por %p33, %p34
    %p36 = scmp.ne.s32.totalorder %s22, %s23
    %p37 = scmp.eq.s32.totalorder %s15, 1
    %p38 = por %p36, %p37
    %p40 = scmp.ne.s32.totalorder %s23, %s39
    %p41 = scmp.eq.s32.totalorder %s15, 0
    %p42 = por %p40, %p41
    %s44 = sadd.s32 %s43, 1
    %p47 = scmp.eq.s32.totalorder %s9, 1
    %p48 = scmp.ne.s32.totalorder %s43, %s45
    %p49 = scmp.eq.s32.totalorder %s9, 0
    %p50 = por %p48, %p49
    %p51 = scmp.ne.s32.totalorder %s43, %s45
    %p52 = scmp.eq.s32.totalorder %s14, 1
    %p53 = por %p51, %p52
    %p54 = scmp.ne.s32.totalorder %s45, %s46
    %p55 = scmp.eq.s32.totalorder %s14, 0
    %p56 = por %p54, %p55
    %p57 = scmp.ne.s32.totalorder %s45, %s46
    %p58 = scmp.eq.s32.totalorder %s15, 1
    %p59 = por %p57, %p58
    %p61 = scmp.ne.s32.totalorder %s46, %s60
    %p62 = scmp.eq.s32.totalorder %s15, 0
    %p63 = por %p61, %p62
    %s65 = sadd.s32 %s64, 1
    %p68 = scmp.eq.s32.totalorder %s9, 1
    %p69 = scmp.ne.s32.totalorder %s64, %s66
    %p70 = scmp.eq.s32.totalorder %s9, 0
    %p71 = por %p69, %p70
    %p72 = scmp.ne.s32.totalorder %s64, %s66
    %p73 = scmp.eq.s32.totalorder %s14, 1
    %p74 = por %p72, %p73
    %p75 = scmp.ne.s32.totalorder %s66, %s67
    %p76 = scmp.eq.s32.totalorder %s14, 0
    %p77 = por %p75, %p76
    %p78 = scmp.ne.s32.totalorder %s66, %s67
    %p79 = scmp.eq.s32.totalorder %s15, 1
    %p80 = por %p78, %p79
    %p82 = scmp.ne.s32.totalorder %s67, %s81
    %p83 = scmp.eq.s32.totalorder %s15, 0
    %p84 = por %p82, %p83
    %s85 = ssub.s32 %s9, %s16
    %p86 = scmp.eq.s32.totalorder %s85, 0
    %s88 = sadd.s32 %s87, 1
    %s89 = scalar_select %p86, %s87, %s88
    %p92 = pneg %p86
    %p93 = scmp.eq.s32.totalorder %s9, 1
    %p94 = por %p92, %p93
    %p95 = scmp.ne.s32.totalorder %s87, %s90
    %p96 = scmp.eq.s32.totalorder %s9, 0
    %p97 = por %p95, %p96
    %p98 = scmp.ne.s32.totalorder %s87, %s90
    %p99 = scmp.eq.s32.totalorder %s14, 1
    %p100 = por %p98, %p99
    %p101 = scmp.ne.s32.totalorder %s90, %s91
    %p102 = scmp.eq.s32.totalorder %s14, 0
    %p103 = por %p101, %p102
    %p104 = scmp.ne.s32.totalorder %s90, %s91
    %p105 = scmp.eq.s32.totalorder %s15, 1
    %p106 = por %p104, %p105
    %p108 = scmp.ne.s32.totalorder %s91, %s107
    %p109 = scmp.eq.s32.totalorder %s15, 0
    %p110 = por %p108, %p109
    %p111 = scmp.le.s32.totalorder 1, %s9
    %p112 = scmp.lt.s32.totalorder %s9, 3
    %p113 = pnand %p111, %p112
    %p114 = pneg %p113
    // Predicated region
    $region9: #{leaky_relu_conv2d.1} parent=5 // pred_check
      _
    $region10: #{leaky_relu_conv2d.1} parent=5 // pred_check_branch
      %116 = sbr.rel (%p113) target = $region12
    $region11: #{leaky_relu_conv2d.1} parent=5 // pred_region
      %s117 = ssub.s32 %s9, 1
      // Predicated region
      $region13: #{leaky_relu_conv2d.1} parent=11 // pred_check
        %p118 = pneg %p56
      $region14: #{leaky_relu_conv2d.1} parent=11 // pred_check_branch
        %120 = sbr.rel (%p118) target = $region16
      $region15: #{leaky_relu_conv2d.1} parent=11 // pred_region
        _
      $region16: #{leaky_relu_conv2d.1} parent=11 // pred_fallthru
        _
      // Predicated region
      $region17: #{leaky_relu_conv2d.1} parent=11 // pred_check
        %p121 = pneg %p77
      $region18: #{leaky_relu_conv2d.1} parent=11 // pred_check_branch
        %123 = sbr.rel (%p121) target = $region20
      $region19: #{leaky_relu_conv2d.1} parent=11 // pred_region
        _
      $region20: #{leaky_relu_conv2d.1} parent=11 // pred_fallthru
        _
    $region12: #{leaky_relu_conv2d.1} parent=5 // pred_fallthru
      _
    %p124 = scmp.lt.s32.totalorder %s9, 2
    // Predicated region
    $region21: #{leaky_relu_conv2d.1} parent=5 // pred_check
      %p125 = pneg %p124
    $region22: #{leaky_relu_conv2d.1} parent=5 // pred_check_branch
      %127 = sbr.rel (%p125) target = $region24
    $region23: #{leaky_relu_conv2d.1} parent=5 // pred_region
      // Predicated region
      $region25: #{leaky_relu_conv2d.1} parent=23 // pred_check
        %p128 = pneg %p29
      $region26: #{leaky_relu_conv2d.1} parent=23 // pred_check_branch
        %130 = sbr.rel (%p128) target = $region28
      $region27: #{leaky_relu_conv2d.1} parent=23 // pred_region
        %p131 = scmp.lt.s32.totalorder %s9, 1
        %s132 = scalar_select %p131, %s9, 1
        %s133 = smul.addr %s132, 8
        %s134 = smul.addr %s133, 8
        %s135 = scalar_lea.vmem %s0, %s134
      $region28: #{leaky_relu_conv2d.1} parent=23 // pred_fallthru
        _
    $region24: #{leaky_relu_conv2d.1} parent=5 // pred_fallthru
      _
    %p136 = scmp.le.s32.totalorder 1, %s9
    %p137 = scmp.lt.s32.totalorder %s9, 3
    %p138 = pnand %p136, %p137
    %p139 = pneg %p138
    // Predicated region
    $region29: #{leaky_relu_conv2d.1} parent=5 // pred_check
      _
    $region30: #{leaky_relu_conv2d.1} parent=5 // pred_check_branch
      %141 = sbr.rel (%p138) target = $region32
    $region31: #{leaky_relu_conv2d.1} parent=5 // pred_region
      %s142 = ssub.s32 %s9, 1
      %p143 = scmp.lt.s32.totalorder %s14, 1
      %s144 = scalar_select %p143, %s14, 1
      %s145 = smul.addr %s144, 8
      %s146 = smul.addr %s145, 8
      %s147 = scalar_lea.vmem %s0, %s146
      %p148 = pneg %p35
      %p149 = pneg %p32
      %p150 = pneg %p56
      %p151 = pneg %p53
      %p152 = pneg %p77
      %p153 = pneg %p74
      %p154 = pneg %p103
      %p155 = pneg %p100
      %p156 = scmp.lt.s32.totalorder %s14, 1
      %s157 = scalar_select %p156, %s14, 1
      %s158 = smul.addr %s157, 2
      %s159 = smul.addr %s158, 8
      %s160 = scalar_lea.vmem %s3, %s159
      %p161 = scmp.lt.s32.totalorder %s14, 1
      %s162 = scalar_select %p161, %s14, 1
      %s163 = smul.addr %s162, 8
      %s164 = smul.addr %s163, 8
      %s165 = scalar_lea.vmem %s0, %s164
      %p166 = scmp.lt.s32.totalorder %s14, 1
      %s167 = scalar_select %p166, %s14, 1
      %s168 = smul.addr %s167, 2
      %s169 = smul.addr %s168, 8
      %s170 = scalar_lea.vmem %s3, %s169
      %v172 = vld [vmem:[%s1] sm:$0xf]
      %v173 = vld [vmem:[%s2] sm:$0xff]
      %v174 = vld [vmem:[%s165] sm:$0xff]
      %v175 = vld [vmem:[%s165 + $0x8] sm:$0xff]
      %v176 = vld [vmem:[%s165 + $0x10] sm:$0xff]
      %v177 = vld [vmem:[%s165 + $0x18] sm:$0xff]
      %v178 = vld [vmem:[%s165 + $0x20] sm:$0xff]
      %v179 = vld [vmem:[%s165 + $0x28] sm:$0xff]
      %v180 = vld [vmem:[%s165 + $0x30] sm:$0xff]
      %v181 = vld [vmem:[%s165 + $0x38] sm:$0xff]
      %190 = vrot.lane.b32.xlu0 %v174, 127
      %v191 = vpop.permute.xlu0 %190
      %192 = vrot.lane.b32.xlu0 %v175, 127
      %v193 = vpop.permute.xlu0 %192
      %194 = vrot.lane.b32.xlu0 %v176, 127
      %v195 = vpop.permute.xlu0 %194
      %196 = vrot.lane.b32.xlu0 %v177, 127
      %v197 = vpop.permute.xlu0 %196
      %198 = vrot.lane.b32.xlu0 %v178, 127
      %v199 = vpop.permute.xlu0 %198
      %200 = vrot.lane.b32.xlu0 %v179, 127
      %v201 = vpop.permute.xlu0 %200
      %202 = vrot.lane.b32.xlu0 %v180, 127
      %v203 = vpop.permute.xlu0 %202
      %204 = vrot.lane.b32.xlu0 %v181, 127
      %v205 = vpop.permute.xlu0 %204
      %214 = vrot.lane.b32.xlu0 %v174, 1
      %v215 = vpop.permute.xlu0 %214
      %216 = vrot.lane.b32.xlu0 %v175, 1
      %v217 = vpop.permute.xlu0 %216
      %218 = vrot.lane.b32.xlu0 %v176, 1
      %v219 = vpop.permute.xlu0 %218
      %220 = vrot.lane.b32.xlu0 %v177, 1
      %v221 = vpop.permute.xlu0 %220
      %222 = vrot.lane.b32.xlu0 %v178, 1
      %v223 = vpop.permute.xlu0 %222
      %224 = vrot.lane.b32.xlu0 %v179, 1
      %v225 = vpop.permute.xlu0 %224
      %226 = vrot.lane.b32.xlu0 %v180, 1
      %v227 = vpop.permute.xlu0 %226
      %228 = vrot.lane.b32.xlu0 %v181, 1
      %v229 = vpop.permute.xlu0 %228
      %238 = vrot.lane.b32.xlu0 %v174, 3
      %v239 = vpop.permute.xlu0 %238
      %240 = vrot.lane.b32.xlu0 %v175, 3
      %v241 = vpop.permute.xlu0 %240
      %242 = vrot.lane.b32.xlu0 %v176, 3
      %v243 = vpop.permute.xlu0 %242
      %244 = vrot.lane.b32.xlu0 %v177, 3
      %v245 = vpop.permute.xlu0 %244
      %246 = vrot.lane.b32.xlu0 %v178, 3
      %v247 = vpop.permute.xlu0 %246
      %248 = vrot.lane.b32.xlu0 %v179, 3
      %v249 = vpop.permute.xlu0 %248
      %250 = vrot.lane.b32.xlu0 %v180, 3
      %v251 = vpop.permute.xlu0 %250
      %252 = vrot.lane.b32.xlu0 %v181, 3
      %v253 = vpop.permute.xlu0 %252
      %vm262 = vcmask 7168
      %v263 = vsel %vm262, %v191, %v215
      %v264 = vsel %vm262, %v193, %v217
      %v265 = vsel %vm262, %v195, %v219
      %v266 = vsel %vm262, %v197, %v221
      %v267 = vsel %vm262, %v199, %v223
      %v268 = vsel %vm262, %v201, %v225
      %v269 = vsel %vm262, %v203, %v227
      %v270 = vsel %vm262, %v205, %v229
      %vm271 = vcmask 138240
      %v272 = vsel %vm271, %v263, %v239
      %v273 = vsel %vm271, %v264, %v241
      %v274 = vsel %vm271, %v265, %v243
      %v275 = vsel %vm271, %v266, %v245
      %v276 = vsel %vm271, %v267, %v247
      %v277 = vsel %vm271, %v268, %v249
      %v278 = vsel %vm271, %v269, %v251
      %v279 = vsel %vm271, %v270, %v253
      %v284 = vrot.slane %v272, 1
      %v285 = vrot.slane %v274, 1
      %v286 = vrot.slane %v276, 1
      %v287 = vrot.slane %v278, 1
      %vm296 = vcmask 1040384
      %v297 = vrot.slane %v272, 7
      %v298 = vrot.slane %v273, 7
      %v299 = vsel %vm296, %v297, %v298
      %v300 = vrot.slane %v274, 7
      %v301 = vrot.slane %v275, 7
      %v302 = vsel %vm296, %v300, %v301
      %v303 = vrot.slane %v276, 7
      %v304 = vrot.slane %v277, 7
      %v305 = vsel %vm296, %v303, %v304
      %v306 = vrot.slane %v278, 7
      %v307 = vrot.slane %v279, 7
      %v308 = vsel %vm296, %v306, %v307
      %v321 = vrot.slane %v273, 5
      %v322 = vrot.slane %v275, 5
      %v323 = vrot.slane %v277, 5
      %v324 = vrot.slane %v279, 5
      %v329 = vsel %vm296, %v284, %v297
      %v330 = vsel %vm296, %v285, %v300
      %v331 = vsel %vm296, %v286, %v303
      %v332 = vsel %vm296, %v287, %v306
      %v333 = vsel %vm296, %v298, %v321
      %v334 = vsel %vm296, %v301, %v322
      %v335 = vsel %vm296, %v304, %v323
      %v336 = vsel %vm296, %v307, %v324
      %v337 = vcombine.low %v329, %v331
      %v338 = vcombine.high %v329, %v331
      %v340 = vunpack.c.l.s4 1983009808
      %v341 = vunpack.c.0.s8 %v340
      %v342 = vlaneseq
      %v343 = vshrl.u32 %v342, 7
      %v344 = vsub.s32 %v341, %v343
      %v345 = vrot.slane %v337, %v344
      %v347 = vunpack.c.l.s4 1983009808
      %v348 = vunpack.c.0.s8 %v347
      %v349 = vlaneseq
      %v350 = vshrl.u32 %v349, 7
      %v351 = vsub.s32 %v348, %v350
      %v352 = vrot.slane %v338, %v351
      %v353 = vcombine.low %v330, %v332
      %v354 = vcombine.high %v330, %v332
      %v356 = vunpack.c.l.s4 1983009808
      %v357 = vunpack.c.0.s8 %v356
      %v358 = vlaneseq
      %v359 = vshrl.u32 %v358, 7
      %v360 = vsub.s32 %v357, %v359
      %v361 = vrot.slane %v353, %v360
      %v363 = vunpack.c.l.s4 1983009808
      %v364 = vunpack.c.0.s8 %v363
      %v365 = vlaneseq
      %v366 = vshrl.u32 %v365, 7
      %v367 = vsub.s32 %v364, %v366
      %v368 = vrot.slane %v354, %v367
      %v369 = vcombine.low %v345, %v361
      %v370 = vcombine.high %v345, %v361
      %v372 = vunpack.c.l.s4 1934713408
      %v373 = vunpack.c.0.s8 %v372
      %v374 = vlaneseq
      %v375 = vshrl.u32 %v374, 7
      %v376 = vsub.s32 %v373, %v375
      %v377 = vrot.slane %v369, %v376
      %v379 = vunpack.c.l.s4 1934713408
      %v380 = vunpack.c.0.s8 %v379
      %v381 = vlaneseq
      %v382 = vshrl.u32 %v381, 7
      %v383 = vsub.s32 %v380, %v382
      %v384 = vrot.slane %v370, %v383
      %v385 = vcombine.low %v352, %v368
      %v386 = vcombine.high %v352, %v368
      %v388 = vunpack.c.l.s4 1934713408
      %v389 = vunpack.c.0.s8 %v388
      %v390 = vlaneseq
      %v391 = vshrl.u32 %v390, 7
      %v392 = vsub.s32 %v389, %v391
      %v393 = vrot.slane %v385, %v392
      %v395 = vunpack.c.l.s4 1934713408
      %v396 = vunpack.c.0.s8 %v395
      %v397 = vlaneseq
      %v398 = vshrl.u32 %v397, 7
      %v399 = vsub.s32 %v396, %v398
      %v400 = vrot.slane %v386, %v399
      %v401 = vcombine.high %v377, 0.0
      %v402 = vcombine.high %v384, 0.0
      %v403 = vcombine.high %v393, 0.0
      %v404 = vcombine.high %v400, 0.0
      %v405 = vcombine.low %v299, %v305
      %v406 = vcombine.high %v299, %v305
      %v408 = vunpack.c.l.s4 1983009808
      %v409 = vunpack.c.0.s8 %v408
      %v410 = vlaneseq
      %v411 = vshrl.u32 %v410, 7
      %v412 = vsub.s32 %v409, %v411
      %v413 = vrot.slane %v405, %v412
      %v415 = vunpack.c.l.s4 1983009808
      %v416 = vunpack.c.0.s8 %v415
      %v417 = vlaneseq
      %v418 = vshrl.u32 %v417, 7
      %v419 = vsub.s32 %v416, %v418
      %v420 = vrot.slane %v406, %v419
      %v421 = vcombine.low %v302, %v308
      %v422 = vcombine.high %v302, %v308
      %v424 = vunpack.c.l.s4 1983009808
      %v425 = vunpack.c.0.s8 %v424
      %v426 = vlaneseq
      %v427 = vshrl.u32 %v426, 7
      %v428 = vsub.s32 %v425, %v427
      %v429 = vrot.slane %v421, %v428
      %v431 = vunpack.c.l.s4 1983009808
      %v432 = vunpack.c.0.s8 %v431
      %v433 = vlaneseq
      %v434 = vshrl.u32 %v433, 7
      %v435 = vsub.s32 %v432, %v434
      %v436 = vrot.slane %v422, %v435
      %v437 = vcombine.low %v413, %v429
      %v438 = vcombine.high %v413, %v429
      %v440 = vunpack.c.l.s4 1934713408
      %v441 = vunpack.c.0.s8 %v440
      %v442 = vlaneseq
      %v443 = vshrl.u32 %v442, 7
      %v444 = vsub.s32 %v441, %v443
      %v445 = vrot.slane %v437, %v444
      %v447 = vunpack.c.l.s4 1934713408
      %v448 = vunpack.c.0.s8 %v447
      %v449 = vlaneseq
      %v450 = vshrl.u32 %v449, 7
      %v451 = vsub.s32 %v448, %v450
      %v452 = vrot.slane %v438, %v451
      %v453 = vcombine.low %v420, %v436
      %v454 = vcombine.high %v420, %v436
      %v456 = vunpack.c.l.s4 1934713408
      %v457 = vunpack.c.0.s8 %v456
      %v458 = vlaneseq
      %v459 = vshrl.u32 %v458, 7
      %v460 = vsub.s32 %v457, %v459
      %v461 = vrot.slane %v453, %v460
      %v463 = vunpack.c.l.s4 1934713408
      %v464 = vunpack.c.0.s8 %v463
      %v465 = vlaneseq
      %v466 = vshrl.u32 %v465, 7
      %v467 = vsub.s32 %v464, %v466
      %v468 = vrot.slane %v454, %v467
      %v469 = vcombine.high %v445, 0.0
      %v470 = vcombine.high %v452, 0.0
      %v471 = vcombine.high %v461, 0.0
      %v472 = vcombine.high %v468, 0.0
      %v473 = vcombine.low %v333, %v335
      %v475 = vunpack.c.l.s4 1983009808
      %v476 = vunpack.c.0.s8 %v475
      %v477 = vlaneseq
      %v478 = vshrl.u32 %v477, 7
      %v479 = vsub.s32 %v476, %v478
      %v480 = vrot.slane %v473, %v479
      %v481 = vcombine.low %v334, %v336
      %v483 = vunpack.c.l.s4 1983009808
      %v484 = vunpack.c.0.s8 %v483
      %v485 = vlaneseq
      %v486 = vshrl.u32 %v485, 7
      %v487 = vsub.s32 %v484, %v486
      %v488 = vrot.slane %v481, %v487
      %v489 = vcombine.low %v480, %v488
      %v491 = vunpack.c.l.s4 1934713408
      %v492 = vunpack.c.0.s8 %v491
      %v493 = vlaneseq
      %v494 = vshrl.u32 %v493, 7
      %v495 = vsub.s32 %v492, %v494
      %v496 = vrot.slane %v489, %v495
      %v497 = vcombine.high %v496, 0.0
      %499 = vrot.lane.b32.xlu0 %v401, 18
      %v500 = vpop.permute.xlu0 %499
      %503 = vrot.lane.b32.xlu0 %v384, 36
      %v504 = vpop.permute.xlu0 %503
      %507 = vrot.lane.b32.xlu0 %v402, 54
      %v508 = vpop.permute.xlu0 %507
      %511 = vrot.lane.b32.xlu0 %v393, 72
      %v512 = vpop.permute.xlu0 %511
      %515 = vrot.lane.b32.xlu0 %v403, 90
      %v516 = vpop.permute.xlu0 %515
      %519 = vrot.lane.b32.xlu0 %v400, 108
      %v520 = vpop.permute.xlu0 %519
      %523 = vrot.lane.b32.xlu0 %v404, 126
      %v524 = vpop.permute.xlu0 %523
      %527 = vrot.lane.b32.xlu0 %v445, 16
      %v528 = vpop.permute.xlu0 %527
      %531 = vrot.lane.b32.xlu0 %v469, 34
      %v532 = vpop.permute.xlu0 %531
      %535 = vrot.lane.b32.xlu0 %v452, 52
      %v536 = vpop.permute.xlu0 %535
      %539 = vrot.lane.b32.xlu0 %v470, 70
      %v540 = vpop.permute.xlu0 %539
      %543 = vrot.lane.b32.xlu0 %v461, 88
      %v544 = vpop.permute.xlu0 %543
      %547 = vrot.lane.b32.xlu0 %v471, 106
      %v548 = vpop.permute.xlu0 %547
      %551 = vrot.lane.b32.xlu0 %v468, 124
      %v552 = vpop.permute.xlu0 %551
      %555 = vrot.lane.b32.xlu0 %v472, 14
      %v556 = vpop.permute.xlu0 %555
      %559 = vrot.lane.b32.xlu0 %v496, 32
      %v560 = vpop.permute.xlu0 %559
      %563 = vrot.lane.b32.xlu0 %v497, 50
      %v564 = vpop.permute.xlu0 %563
      %vm566 = vcmask 146432
      %v567 = vsel %vm566, %v377, %v500
      %vm568 = vcmask 293888
      %v569 = vsel %vm568, %v567, %v504
      %vm570 = vcmask 441344
      %v571 = vsel %vm570, %v569, %v508
      %vm572 = vcmask 588800
      %v573 = vsel %vm572, %v571, %v512
      %vm574 = vcmask 736256
      %v575 = vsel %vm574, %v573, %v516
      %vm576 = vcmask 883712
      %v577 = vsel %vm576, %v575, %v520
      %vm578 = vcmask 1031168
      %v579 = vsel %vm578, %v577, %v524
      %vm580 = vcmask 130048
      %v581 = vsel %vm580, %v524, %v528
      %vm582 = vcmask 277504
      %v583 = vsel %vm582, %v581, %v532
      %vm584 = vcmask 424960
      %v585 = vsel %vm584, %v583, %v536
      %vm586 = vcmask 572416
      %v587 = vsel %vm586, %v585, %v540
      %vm588 = vcmask 719872
      %v589 = vsel %vm588, %v587, %v544
      %vm590 = vcmask 867328
      %v591 = vsel %vm590, %v589, %v548
      %vm592 = vcmask 1014784
      %v593 = vsel %vm592, %v591, %v552
      %vm594 = vcmask 113664
      %v595 = vsel %vm594, %v552, %v556
      %vm596 = vcmask 261120
      %v597 = vsel %vm596, %v595, %v560
      %vm598 = vcmask 408576
      %v599 = vsel %vm598, %v597, %v564
      %v603 = vrot.slane %v579, 4
      %v604 = vrot.slane %v593, 4
      %v605 = vrot.slane %v599, 4
      %606 = vrot.lane.b32.xlu0 %v603, 127
      %v607 = vpop.permute.xlu0 %606
      %608 = vrot.lane.b32.xlu0 %v604, 127
      %v609 = vpop.permute.xlu0 %608
      %610 = vrot.lane.b32.xlu0 %v605, 127
      %v611 = vpop.permute.xlu0 %610
      %vm612 = vcmask 1039360
      %v613 = vsel %vm612, %v607, %v609
      %v614 = vsel %vm612, %v609, %v611
      %618 = vrot.lane.b32.xlu0 %v579, 126
      %v619 = vpop.permute.xlu0 %618
      %620 = vrot.lane.b32.xlu0 %v593, 126
      %v621 = vpop.permute.xlu0 %620
      %622 = vrot.lane.b32.xlu0 %v599, 126
      %v623 = vpop.permute.xlu0 %622
      %v624 = vsel %vm578, %v619, %v621
      %v625 = vsel %vm578, %v621, %v623
      %629 = vrot.lane.b32.xlu0 %v603, 110
      %v630 = vpop.permute.xlu0 %629
      %631 = vrot.lane.b32.xlu0 %v604, 110
      %v632 = vpop.permute.xlu0 %631
      %633 = vrot.lane.b32.xlu0 %v605, 110
      %v634 = vpop.permute.xlu0 %633
      %vm635 = vcmask 900096
      %v636 = vsel %vm635, %v630, %v632
      %v637 = vsel %vm635, %v632, %v634
      %641 = vrot.lane.b32.xlu0 %v579, 109
      %v642 = vpop.permute.xlu0 %641
      %643 = vrot.lane.b32.xlu0 %v593, 109
      %v644 = vpop.permute.xlu0 %643
      %645 = vrot.lane.b32.xlu0 %v599, 109
      %v646 = vpop.permute.xlu0 %645
      %vm647 = vcmask 891904
      %v648 = vsel %vm647, %v642, %v644
      %v649 = vsel %vm647, %v644, %v646
      %653 = vrot.lane.b32.xlu0 %v603, 108
      %v654 = vpop.permute.xlu0 %653
      %655 = vrot.lane.b32.xlu0 %v604, 108
      %v656 = vpop.permute.xlu0 %655
      %657 = vrot.lane.b32.xlu0 %v605, 108
      %v658 = vpop.permute.xlu0 %657
      %v659 = vsel %vm576, %v654, %v656
      %v660 = vsel %vm576, %v656, %v658
      %664 = vrot.lane.b32.xlu0 %v579, 92
      %v665 = vpop.permute.xlu0 %664
      %666 = vrot.lane.b32.xlu0 %v593, 92
      %v667 = vpop.permute.xlu0 %666
      %668 = vrot.lane.b32.xlu0 %v599, 92
      %v669 = vpop.permute.xlu0 %668
      %vm670 = vcmask 752640
      %v671 = vsel %vm670, %v665, %v667
      %v672 = vsel %vm670, %v667, %v669
      %676 = vrot.lane.b32.xlu0 %v603, 91
      %v677 = vpop.permute.xlu0 %676
      %678 = vrot.lane.b32.xlu0 %v604, 91
      %v679 = vpop.permute.xlu0 %678
      %680 = vrot.lane.b32.xlu0 %v605, 91
      %v681 = vpop.permute.xlu0 %680
      %vm682 = vcmask 744448
      %v683 = vsel %vm682, %v677, %v679
      %v684 = vsel %vm682, %v679, %v681
      %688 = vrot.lane.b32.xlu0 %v579, 90
      %v689 = vpop.permute.xlu0 %688
      %690 = vrot.lane.b32.xlu0 %v593, 90
      %v691 = vpop.permute.xlu0 %690
      %692 = vrot.lane.b32.xlu0 %v599, 90
      %v693 = vpop.permute.xlu0 %692
      %v694 = vsel %vm574, %v689, %v691
      %v695 = vsel %vm574, %v691, %v693
      %vm699 = vcmask 1043456
      %v700 = vsel %vm699, %v579, %v613
      %v701 = vsel %vm699, %v593, %v614
      %v702 = vsel %vm699, %v599, %v611
      %v703 = vsel %vm699, %v624, %v636
      %v704 = vsel %vm699, %v625, %v637
      %v705 = vsel %vm699, %v623, %v634
      %v706 = vsel %vm699, %v648, %v659
      %v707 = vsel %vm699, %v649, %v660
      %v708 = vsel %vm699, %v646, %v658
      %v709 = vsel %vm699, %v671, %v683
      %v710 = vsel %vm699, %v672, %v684
      %v711 = vsel %vm699, %v669, %v681
      %v712 = vpack.c.bf16 %v703, %v700
      %v713 = vpack.c.bf16 %v704, %v701
      %v714 = vpack.c.bf16 %v705, %v702
      %v715 = vpack.c.bf16 %v709, %v706
      %v716 = vpack.c.bf16 %v710, %v707
      %v717 = vpack.c.bf16 %v711, %v708
      %v718 = vpack.c.bf16 %v694, %v694
      %v719 = vpack.c.bf16 %v695, %v695
      %v720 = vpack.c.bf16 %v693, %v693
      %v722 = vsel %vm568, %v172, 0
      %vm724 = vcmask 1041408
      %v726 = vsel %vm724, %v718, 0
      %v729 = vsel %vm724, %v719, 0
      %v732 = vsel %vm724, %v720, 0
      %734 = vmatprep.subr.bf16.mxu0 %v713
      %735 = vmatpush1.bf16.msra.mxu0 %v712
      %736 = vmatprep.subr.bf16.mxu0 %v716
      %737 = vmatpush1.bf16.msra.mxu0 %v715
      %738 = vmatprep.subr.bf16.mxu0 %v729
      %739 = vmatpush1.bf16.msra.mxu0 %v726
      %740 = vmatprep.subr.bf16.mxu0 0
      %741 = vmatpush1.bf16.msra.mxu0 0
      %742 = vmatprep.subr.bf16.mxu0 0
      %743 = vmatpush1.bf16.msra.mxu0 0
      %744 = vmatprep.subr.bf16.mxu0 0
      %745 = vmatpush1.bf16.msra.mxu0 0
      %746 = vmatprep.subr.bf16.mxu0 0
      %747 = vmatpush1.bf16.msra.mxu0 0
      %748 = vmatprep.subr.bf16.mxu0 0
      %749 = vmatpush1.bf16.msra.mxu0 0
      %750 = vmatprep.subr.bf16.mxu0 0
      %751 = vmatpush1.bf16.msra.mxu0 0
      %752 = vmatprep.subr.bf16.mxu0 0
      %753 = vmatpush1.bf16.msra.mxu0 0
      %754 = vmatprep.subr.bf16.mxu0 0
      %755 = vmatpush1.bf16.msra.mxu0 0
      %756 = vmatprep.subr.bf16.mxu0 0
      %757 = vmatpush1.bf16.msra.mxu0 0
      %758 = vmatprep.subr.bf16.mxu0 0
      %759 = vmatpush1.bf16.msra.mxu0 0
      %760 = vmatprep.subr.bf16.mxu0 0
      %761 = vmatpush1.bf16.msra.mxu0 0
      %762 = vmatprep.subr.bf16.mxu0 0
      %763 = vmatpush1.bf16.msra.mxu0 0
      %764 = vmatprep.subr.bf16.mxu0 0
      %765 = vmatpush1.bf16.msra.mxu0 0
      %766 = vmatprep.mubr.bf16.mxu0 0
      %767 = vmatmul.mubr.bf16.gmra.mrb[0].mxu0 %v722
      %v768 = vpop.f32.mrb[0].mxu0
      %v769 = vadd.f32 0.0, %v768
      %v770 = vpop.f32.mrb[0].mxu0
      %v771 = vadd.f32 0.0, %v770
      %v772 = vpop.f32.mrb[0].mxu0
      %v773 = vpop.f32.mrb[0].mxu0
      %774 = vdwg.mxu0
      %775 = vmatprep.subr.bf16.mxu0 0
      %776 = vmatpush1.bf16.msra.mxu0 %v714
      %777 = vmatprep.subr.bf16.mxu0 0
      %778 = vmatpush1.bf16.msra.mxu0 %v717
      %779 = vmatprep.subr.bf16.mxu0 0
      %780 = vmatpush1.bf16.msra.mxu0 %v732
      %781 = vmatprep.subr.bf16.mxu0 0
      %782 = vmatpush1.bf16.msra.mxu0 0
      %783 = vmatprep.subr.bf16.mxu0 0
      %784 = vmatpush1.bf16.msra.mxu0 0
      %785 = vmatprep.subr.bf16.mxu0 0
      %786 = vmatpush1.bf16.msra.mxu0 0
      %787 = vmatprep.subr.bf16.mxu0 0
      %788 = vmatpush1.bf16.msra.mxu0 0
      %789 = vmatprep.subr.bf16.mxu0 0
      %790 = vmatpush1.bf16.msra.mxu0 0
      %791 = vmatprep.subr.bf16.mxu0 0
      %792 = vmatpush1.bf16.msra.mxu0 0
      %793 = vmatprep.subr.bf16.mxu0 0
      %794 = vmatpush1.bf16.msra.mxu0 0
      %795 = vmatprep.subr.bf16.mxu0 0
      %796 = vmatpush1.bf16.msra.mxu0 0
      %797 = vmatprep.subr.bf16.mxu0 0
      %798 = vmatpush1.bf16.msra.mxu0 0
      %799 = vmatprep.subr.bf16.mxu0 0
      %800 = vmatpush1.bf16.msra.mxu0 0
      %801 = vmatprep.subr.bf16.mxu0 0
      %802 = vmatpush1.bf16.msra.mxu0 0
      %803 = vmatprep.subr.bf16.mxu0 0
      %804 = vmatpush1.bf16.msra.mxu0 0
      %805 = vmatprep.subr.bf16.mxu0 0
      %806 = vmatpush1.bf16.msra.mxu0 0
      %807 = vmatprep.mubr.bf16.mxu0 0
      %808 = vmatmul.mubr.bf16.gmra.mrb[0].mxu0 %v722
      %v809 = vpop.f32.mrb[0].mxu0
      %v810 = vadd.f32 0.0, %v809
      %v811 = vpop.f32.mrb[0].mxu0
      %v812 = vpop.f32.mrb[0].mxu0
      %v813 = vpop.f32.mrb[0].mxu0
      %814 = vdwg.mxu0
      %vm815 = vcmask 244736
      %v816 = vsel %vm815, %v810, 0.0
      %818 = vrot.lane.b32.xlu0 %v769, 110
      %v819 = vpop.permute.xlu0 %818
      %821 = vrot.lane.b32.xlu0 %v769, 92
      %v822 = vpop.permute.xlu0 %821
      %824 = vrot.lane.b32.xlu0 %v769, 74
      %v825 = vpop.permute.xlu0 %824
      %827 = vrot.lane.b32.xlu0 %v769, 56
      %v828 = vpop.permute.xlu0 %827
      %830 = vrot.lane.b32.xlu0 %v769, 38
      %v831 = vpop.permute.xlu0 %830
      %833 = vrot.lane.b32.xlu0 %v769, 20
      %v834 = vpop.permute.xlu0 %833
      %837 = vrot.lane.b32.xlu0 %v769, 2
      %v838 = vpop.permute.xlu0 %837
      %839 = vrot.lane.b32.xlu0 %v771, 2
      %v840 = vpop.permute.xlu0 %839
      %vm841 = vcmask 15360
      %v842 = vsel %vm841, %v838, %v840
      %844 = vrot.lane.b32.xlu0 %v771, 112
      %v845 = vpop.permute.xlu0 %844
      %847 = vrot.lane.b32.xlu0 %v771, 94
      %v848 = vpop.permute.xlu0 %847
      %850 = vrot.lane.b32.xlu0 %v771, 76
      %v851 = vpop.permute.xlu0 %850
      %853 = vrot.lane.b32.xlu0 %v771, 58
      %v854 = vpop.permute.xlu0 %853
      %856 = vrot.lane.b32.xlu0 %v771, 40
      %v857 = vpop.permute.xlu0 %856
      %859 = vrot.lane.b32.xlu0 %v771, 22
      %v860 = vpop.permute.xlu0 %859
      %863 = vrot.lane.b32.xlu0 %v771, 4
      %v864 = vpop.permute.xlu0 %863
      %865 = vrot.lane.b32.xlu0 %v816, 4
      %v866 = vpop.permute.xlu0 %865
      %vm867 = vcmask 31744
      %v868 = vsel %vm867, %v864, %v866
      %870 = vrot.lane.b32.xlu0 %v816, 114
      %v871 = vpop.permute.xlu0 %870
      %v873 = vcombine.low %v769, %v822
      %v874 = vcombine.high %v769, %v822
      %v876 = vunpack.c.l.s4 1983009808
      %v877 = vunpack.c.0.s8 %v876
      %v878 = vlaneseq
      %v879 = vshrl.u32 %v878, 7
      %v880 = vsub.s32 %v877, %v879
      %v881 = vrot.slane %v873, %v880
      %v883 = vunpack.c.l.s4 1983009808
      %v884 = vunpack.c.0.s8 %v883
      %v885 = vlaneseq
      %v886 = vshrl.u32 %v885, 7
      %v887 = vsub.s32 %v884, %v886
      %v888 = vrot.slane %v874, %v887
      %v889 = vcombine.low %v819, %v825
      %v890 = vcombine.high %v819, %v825
      %v892 = vunpack.c.l.s4 1983009808
      %v893 = vunpack.c.0.s8 %v892
      %v894 = vlaneseq
      %v895 = vshrl.u32 %v894, 7
      %v896 = vsub.s32 %v893, %v895
      %v897 = vrot.slane %v889, %v896
      %v899 = vunpack.c.l.s4 1983009808
      %v900 = vunpack.c.0.s8 %v899
      %v901 = vlaneseq
      %v902 = vshrl.u32 %v901, 7
      %v903 = vsub.s32 %v900, %v902
      %v904 = vrot.slane %v890, %v903
      %v905 = vcombine.low %v828, %v834
      %v906 = vcombine.high %v828, %v834
      %v908 = vunpack.c.l.s4 1983009808
      %v909 = vunpack.c.0.s8 %v908
      %v910 = vlaneseq
      %v911 = vshrl.u32 %v910, 7
      %v912 = vsub.s32 %v909, %v911
      %v913 = vrot.slane %v905, %v912
      %v915 = vunpack.c.l.s4 1983009808
      %v916 = vunpack.c.0.s8 %v915
      %v917 = vlaneseq
      %v918 = vshrl.u32 %v917, 7
      %v919 = vsub.s32 %v916, %v918
      %v920 = vrot.slane %v906, %v919
      %v921 = vcombine.low %v831, %v842
      %v922 = vcombine.high %v831, %v842
      %v924 = vunpack.c.l.s4 1983009808
      %v925 = vunpack.c.0.s8 %v924
      %v926 = vlaneseq
      %v927 = vshrl.u32 %v926, 7
      %v928 = vsub.s32 %v925, %v927
      %v929 = vrot.slane %v921, %v928
      %v931 = vunpack.c.l.s4 1983009808
      %v932 = vunpack.c.0.s8 %v931
      %v933 = vlaneseq
      %v934 = vshrl.u32 %v933, 7
      %v935 = vsub.s32 %v932, %v934
      %v936 = vrot.slane %v922, %v935
      %v937 = vcombine.low %v881, %v897
      %v938 = vcombine.high %v881, %v897
      %v940 = vunpack.c.l.s4 1934713408
      %v941 = vunpack.c.0.s8 %v940
      %v942 = vlaneseq
      %v943 = vshrl.u32 %v942, 7
      %v944 = vsub.s32 %v941, %v943
      %v945 = vrot.slane %v937, %v944
      %v947 = vunpack.c.l.s4 1934713408
      %v948 = vunpack.c.0.s8 %v947
      %v949 = vlaneseq
      %v950 = vshrl.u32 %v949, 7
      %v951 = vsub.s32 %v948, %v950
      %v952 = vrot.slane %v938, %v951
      %v953 = vcombine.low %v888, %v904
      %v954 = vcombine.high %v888, %v904
      %v956 = vunpack.c.l.s4 1934713408
      %v957 = vunpack.c.0.s8 %v956
      %v958 = vlaneseq
      %v959 = vshrl.u32 %v958, 7
      %v960 = vsub.s32 %v957, %v959
      %v961 = vrot.slane %v953, %v960
      %v963 = vunpack.c.l.s4 1934713408
      %v964 = vunpack.c.0.s8 %v963
      %v965 = vlaneseq
      %v966 = vshrl.u32 %v965, 7
      %v967 = vsub.s32 %v964, %v966
      %v968 = vrot.slane %v954, %v967
      %v969 = vcombine.low %v913, %v929
      %v970 = vcombine.high %v913, %v929
      %v972 = vunpack.c.l.s4 1934713408
      %v973 = vunpack.c.0.s8 %v972
      %v974 = vlaneseq
      %v975 = vshrl.u32 %v974, 7
      %v976 = vsub.s32 %v973, %v975
      %v977 = vrot.slane %v969, %v976
      %v979 = vunpack.c.l.s4 1934713408
      %v980 = vunpack.c.0.s8 %v979
      %v981 = vlaneseq
      %v982 = vshrl.u32 %v981, 7
      %v983 = vsub.s32 %v980, %v982
      %v984 = vrot.slane %v970, %v983
      %v985 = vcombine.low %v920, %v936
      %v986 = vcombine.high %v920, %v936
      %v988 = vunpack.c.l.s4 1934713408
      %v989 = vunpack.c.0.s8 %v988
      %v990 = vlaneseq
      %v991 = vshrl.u32 %v990, 7
      %v992 = vsub.s32 %v989, %v991
      %v993 = vrot.slane %v985, %v992
      %v995 = vunpack.c.l.s4 1934713408
      %v996 = vunpack.c.0.s8 %v995
      %v997 = vlaneseq
      %v998 = vshrl.u32 %v997, 7
      %v999 = vsub.s32 %v996, %v998
      %v1000 = vrot.slane %v986, %v999
      %v1001 = vcombine.low %v945, %v977
      %v1002 = vcombine.high %v945, %v977
      %v1003 = vcombine.low %v952, %v984
      %v1004 = vcombine.high %v952, %v984
      %v1005 = vcombine.low %v961, %v993
      %v1006 = vcombine.high %v961, %v993
      %v1007 = vcombine.low %v968, %v1000
      %v1008 = vcombine.high %v968, %v1000
      %v1009 = vcombine.low %v845, %v851
      %v1010 = vcombine.high %v845, %v851
      %v1012 = vunpack.c.l.s4 1983009808
      %v1013 = vunpack.c.0.s8 %v1012
      %v1014 = vlaneseq
      %v1015 = vshrl.u32 %v1014, 7
      %v1016 = vsub.s32 %v1013, %v1015
      %v1017 = vrot.slane %v1009, %v1016
      %v1019 = vunpack.c.l.s4 1983009808
      %v1020 = vunpack.c.0.s8 %v1019
      %v1021 = vlaneseq
      %v1022 = vshrl.u32 %v1021, 7
      %v1023 = vsub.s32 %v1020, %v1022
      %v1024 = vrot.slane %v1010, %v1023
      %v1025 = vcombine.low %v848, %v854
      %v1026 = vcombine.high %v848, %v854
      %v1028 = vunpack.c.l.s4 1983009808
      %v1029 = vunpack.c.0.s8 %v1028
      %v1030 = vlaneseq
      %v1031 = vshrl.u32 %v1030, 7
      %v1032 = vsub.s32 %v1029, %v1031
      %v1033 = vrot.slane %v1025, %v1032
      %v1035 = vunpack.c.l.s4 1983009808
      %v1036 = vunpack.c.0.s8 %v1035
      %v1037 = vlaneseq
      %v1038 = vshrl.u32 %v1037, 7
      %v1039 = vsub.s32 %v1036, %v1038
      %v1040 = vrot.slane %v1026, %v1039
      %v1041 = vcombine.low %v857, %v868
      %v1042 = vcombine.high %v857, %v868
      %v1044 = vunpack.c.l.s4 1983009808
      %v1045 = vunpack.c.0.s8 %v1044
      %v1046 = vlaneseq
      %v1047 = vshrl.u32 %v1046, 7
      %v1048 = vsub.s32 %v1045, %v1047
      %v1049 = vrot.slane %v1041, %v1048
      %v1051 = vunpack.c.l.s4 1983009808
      %v1052 = vunpack.c.0.s8 %v1051
      %v1053 = vlaneseq
      %v1054 = vshrl.u32 %v1053, 7
      %v1055 = vsub.s32 %v1052, %v1054
      %v1056 = vrot.slane %v1042, %v1055
      %v1057 = vcombine.low %v860, %v871
      %v1058 = vcombine.high %v860, %v871
      %v1060 = vunpack.c.l.s4 1983009808
      %v1061 = vunpack.c.0.s8 %v1060
      %v1062 = vlaneseq
      %v1063 = vshrl.u32 %v1062, 7
      %v1064 = vsub.s32 %v1061, %v1063
      %v1065 = vrot.slane %v1057, %v1064
      %v1067 = vunpack.c.l.s4 1983009808
      %v1068 = vunpack.c.0.s8 %v1067
      %v1069 = vlaneseq
      %v1070 = vshrl.u32 %v1069, 7
      %v1071 = vsub.s32 %v1068, %v1070
      %v1072 = vrot.slane %v1058, %v1071
      %v1073 = vcombine.low %v1017, %v1033
      %v1074 = vcombine.high %v1017, %v1033
      %v1076 = vunpack.c.l.s4 1934713408
      %v1077 = vunpack.c.0.s8 %v1076
      %v1078 = vlaneseq
      %v1079 = vshrl.u32 %v1078, 7
      %v1080 = vsub.s32 %v1077, %v1079
      %v1081 = vrot.slane %v1073, %v1080
      %v1083 = vunpack.c.l.s4 1934713408
      %v1084 = vunpack.c.0.s8 %v1083
      %v1085 = vlaneseq
      %v1086 = vshrl.u32 %v1085, 7
      %v1087 = vsub.s32 %v1084, %v1086
      %v1088 = vrot.slane %v1074, %v1087
      %v1089 = vcombine.low %v1024, %v1040
      %v1090 = vcombine.high %v1024, %v1040
      %v1092 = vunpack.c.l.s4 1934713408
      %v1093 = vunpack.c.0.s8 %v1092
      %v1094 = vlaneseq
      %v1095 = vshrl.u32 %v1094, 7
      %v1096 = vsub.s32 %v1093, %v1095
      %v1097 = vrot.slane %v1089, %v1096
      %v1099 = vunpack.c.l.s4 1934713408
      %v1100 = vunpack.c.0.s8 %v1099
      %v1101 = vlaneseq
      %v1102 = vshrl.u32 %v1101, 7
      %v1103 = vsub.s32 %v1100, %v1102
      %v1104 = vrot.slane %v1090, %v1103
      %v1105 = vcombine.low %v1049, %v1065
      %v1106 = vcombine.high %v1049, %v1065
      %v1108 = vunpack.c.l.s4 1934713408
      %v1109 = vunpack.c.0.s8 %v1108
      %v1110 = vlaneseq
      %v1111 = vshrl.u32 %v1110, 7
      %v1112 = vsub.s32 %v1109, %v1111
      %v1113 = vrot.slane %v1105, %v1112
      %v1115 = vunpack.c.l.s4 1934713408
      %v1116 = vunpack.c.0.s8 %v1115
      %v1117 = vlaneseq
      %v1118 = vshrl.u32 %v1117, 7
      %v1119 = vsub.s32 %v1116, %v1118
      %v1120 = vrot.slane %v1106, %v1119
      %v1121 = vcombine.low %v1056, %v1072
      %v1122 = vcombine.high %v1056, %v1072
      %v1124 = vunpack.c.l.s4 1934713408
      %v1125 = vunpack.c.0.s8 %v1124
      %v1126 = vlaneseq
      %v1127 = vshrl.u32 %v1126, 7
      %v1128 = vsub.s32 %v1125, %v1127
      %v1129 = vrot.slane %v1121, %v1128
      %v1131 = vunpack.c.l.s4 1934713408
      %v1132 = vunpack.c.0.s8 %v1131
      %v1133 = vlaneseq
      %v1134 = vshrl.u32 %v1133, 7
      %v1135 = vsub.s32 %v1132, %v1134
      %v1136 = vrot.slane %v1122, %v1135
      %v1137 = vcombine.low %v1081, %v1113
      %v1138 = vcombine.high %v1081, %v1113
      %v1139 = vcombine.low %v1088, %v1120
      %v1140 = vcombine.high %v1088, %v1120
      %v1141 = vcombine.low %v1097, %v1129
      %v1142 = vcombine.high %v1097, %v1129
      %v1143 = vcombine.low %v1104, %v1136
      %v1144 = vcombine.high %v1104, %v1136
      %v1145 = vcombine.low %v1001, %v1003
      %v1146 = vcombine.high %v1001, %v1003
      %v1148 = vunpack.c.l.s4 1983009808
      %v1149 = vunpack.c.0.s8 %v1148
      %v1150 = vlaneseq
      %v1151 = vshrl.u32 %v1150, 7
      %v1152 = vsub.s32 %v1149, %v1151
      %v1153 = vrot.slane %v1145, %v1152
      %v1155 = vunpack.c.l.s4 1983009808
      %v1156 = vunpack.c.0.s8 %v1155
      %v1157 = vlaneseq
      %v1158 = vshrl.u32 %v1157, 7
      %v1159 = vsub.s32 %v1156, %v1158
      %v1160 = vrot.slane %v1146, %v1159
      %v1161 = vcombine.low %v1002, %v1004
      %v1162 = vcombine.high %v1002, %v1004
      %v1164 = vunpack.c.l.s4 1983009808
      %v1165 = vunpack.c.0.s8 %v1164
      %v1166 = vlaneseq
      %v1167 = vshrl.u32 %v1166, 7
      %v1168 = vsub.s32 %v1165, %v1167
      %v1169 = vrot.slane %v1161, %v1168
      %v1171 = vunpack.c.l.s4 1983009808
      %v1172 = vunpack.c.0.s8 %v1171
      %v1173 = vlaneseq
      %v1174 = vshrl.u32 %v1173, 7
      %v1175 = vsub.s32 %v1172, %v1174
      %v1176 = vrot.slane %v1162, %v1175
      %v1177 = vcombine.low %v1005, %v1007
      %v1178 = vcombine.high %v1005, %v1007
      %v1180 = vunpack.c.l.s4 1983009808
      %v1181 = vunpack.c.0.s8 %v1180
      %v1182 = vlaneseq
      %v1183 = vshrl.u32 %v1182, 7
      %v1184 = vsub.s32 %v1181, %v1183
      %v1185 = vrot.slane %v1177, %v1184
      %v1187 = vunpack.c.l.s4 1983009808
      %v1188 = vunpack.c.0.s8 %v1187
      %v1189 = vlaneseq
      %v1190 = vshrl.u32 %v1189, 7
      %v1191 = vsub.s32 %v1188, %v1190
      %v1192 = vrot.slane %v1178, %v1191
      %v1193 = vcombine.low %v1006, %v1008
      %v1194 = vcombine.high %v1006, %v1008
      %v1196 = vunpack.c.l.s4 1983009808
      %v1197 = vunpack.c.0.s8 %v1196
      %v1198 = vlaneseq
      %v1199 = vshrl.u32 %v1198, 7
      %v1200 = vsub.s32 %v1197, %v1199
      %v1201 = vrot.slane %v1193, %v1200
      %v1203 = vunpack.c.l.s4 1983009808
      %v1204 = vunpack.c.0.s8 %v1203
      %v1205 = vlaneseq
      %v1206 = vshrl.u32 %v1205, 7
      %v1207 = vsub.s32 %v1204, %v1206
      %v1208 = vrot.slane %v1194, %v1207
      %v1209 = vcombine.low %v1153, %v1169
      %v1210 = vcombine.high %v1153, %v1169
      %v1212 = vunpack.c.l.s4 1934713408
      %v1213 = vunpack.c.0.s8 %v1212
      %v1214 = vlaneseq
      %v1215 = vshrl.u32 %v1214, 7
      %v1216 = vsub.s32 %v1213, %v1215
      %v1217 = vrot.slane %v1209, %v1216
      %v1219 = vunpack.c.l.s4 1934713408
      %v1220 = vunpack.c.0.s8 %v1219
      %v1221 = vlaneseq
      %v1222 = vshrl.u32 %v1221, 7
      %v1223 = vsub.s32 %v1220, %v1222
      %v1224 = vrot.slane %v1210, %v1223
      %v1225 = vcombine.low %v1160, %v1176
      %v1226 = vcombine.high %v1160, %v1176
      %v1228 = vunpack.c.l.s4 1934713408
      %v1229 = vunpack.c.0.s8 %v1228
      %v1230 = vlaneseq
      %v1231 = vshrl.u32 %v1230, 7
      %v1232 = vsub.s32 %v1229, %v1231
      %v1233 = vrot.slane %v1225, %v1232
      %v1235 = vunpack.c.l.s4 1934713408
      %v1236 = vunpack.c.0.s8 %v1235
      %v1237 = vlaneseq
      %v1238 = vshrl.u32 %v1237, 7
      %v1239 = vsub.s32 %v1236, %v1238
      %v1240 = vrot.slane %v1226, %v1239
      %v1241 = vcombine.low %v1185, %v1201
      %v1242 = vcombine.high %v1185, %v1201
      %v1244 = vunpack.c.l.s4 1934713408
      %v1245 = vunpack.c.0.s8 %v1244
      %v1246 = vlaneseq
      %v1247 = vshrl.u32 %v1246, 7
      %v1248 = vsub.s32 %v1245, %v1247
      %v1249 = vrot.slane %v1241, %v1248
      %v1251 = vunpack.c.l.s4 1934713408
      %v1252 = vunpack.c.0.s8 %v1251
      %v1253 = vlaneseq
      %v1254 = vshrl.u32 %v1253, 7
      %v1255 = vsub.s32 %v1252, %v1254
      %v1256 = vrot.slane %v1242, %v1255
      %v1257 = vcombine.low %v1192, %v1208
      %v1258 = vcombine.high %v1192, %v1208
      %v1260 = vunpack.c.l.s4 1934713408
      %v1261 = vunpack.c.0.s8 %v1260
      %v1262 = vlaneseq
      %v1263 = vshrl.u32 %v1262, 7
      %v1264 = vsub.s32 %v1261, %v1263
      %v1265 = vrot.slane %v1257, %v1264
      %v1267 = vunpack.c.l.s4 1934713408
      %v1268 = vunpack.c.0.s8 %v1267
      %v1269 = vlaneseq
      %v1270 = vshrl.u32 %v1269, 7
      %v1271 = vsub.s32 %v1268, %v1270
      %v1272 = vrot.slane %v1258, %v1271
      %v1273 = vcombine.low %v1217, %v1249
      %v1274 = vcombine.high %v1217, %v1249
      %v1275 = vcombine.low %v1224, %v1256
      %v1276 = vcombine.high %v1224, %v1256
      %v1277 = vcombine.low %v1233, %v1265
      %v1278 = vcombine.high %v1233, %v1265
      %v1279 = vcombine.low %v1240, %v1272
      %v1280 = vcombine.high %v1240, %v1272
      %v1281 = vcombine.low %v1137, %v1139
      %v1282 = vcombine.high %v1137, %v1139
      %v1284 = vunpack.c.l.s4 1983009808
      %v1285 = vunpack.c.0.s8 %v1284
      %v1286 = vlaneseq
      %v1287 = vshrl.u32 %v1286, 7
      %v1288 = vsub.s32 %v1285, %v1287
      %v1289 = vrot.slane %v1281, %v1288
      %v1291 = vunpack.c.l.s4 1983009808
      %v1292 = vunpack.c.0.s8 %v1291
      %v1293 = vlaneseq
      %v1294 = vshrl.u32 %v1293, 7
      %v1295 = vsub.s32 %v1292, %v1294
      %v1296 = vrot.slane %v1282, %v1295
      %v1297 = vcombine.low %v1138, %v1140
      %v1298 = vcombine.high %v1138, %v1140
      %v1300 = vunpack.c.l.s4 1983009808
      %v1301 = vunpack.c.0.s8 %v1300
      %v1302 = vlaneseq
      %v1303 = vshrl.u32 %v1302, 7
      %v1304 = vsub.s32 %v1301, %v1303
      %v1305 = vrot.slane %v1297, %v1304
      %v1307 = vunpack.c.l.s4 1983009808
      %v1308 = vunpack.c.0.s8 %v1307
      %v1309 = vlaneseq
      %v1310 = vshrl.u32 %v1309, 7
      %v1311 = vsub.s32 %v1308, %v1310
      %v1312 = vrot.slane %v1298, %v1311
      %v1313 = vcombine.low %v1141, %v1143
      %v1314 = vcombine.high %v1141, %v1143
      %v1316 = vunpack.c.l.s4 1983009808
      %v1317 = vunpack.c.0.s8 %v1316
      %v1318 = vlaneseq
      %v1319 = vshrl.u32 %v1318, 7
      %v1320 = vsub.s32 %v1317, %v1319
      %v1321 = vrot.slane %v1313, %v1320
      %v1323 = vunpack.c.l.s4 1983009808
      %v1324 = vunpack.c.0.s8 %v1323
      %v1325 = vlaneseq
      %v1326 = vshrl.u32 %v1325, 7
      %v1327 = vsub.s32 %v1324, %v1326
      %v1328 = vrot.slane %v1314, %v1327
      %v1329 = vcombine.low %v1142, %v1144
      %v1330 = vcombine.high %v1142, %v1144
      %v1332 = vunpack.c.l.s4 1983009808
      %v1333 = vunpack.c.0.s8 %v1332
      %v1334 = vlaneseq
      %v1335 = vshrl.u32 %v1334, 7
      %v1336 = vsub.s32 %v1333, %v1335
      %v1337 = vrot.slane %v1329, %v1336
      %v1339 = vunpack.c.l.s4 1983009808
      %v1340 = vunpack.c.0.s8 %v1339
      %v1341 = vlaneseq
      %v1342 = vshrl.u32 %v1341, 7
      %v1343 = vsub.s32 %v1340, %v1342
      %v1344 = vrot.slane %v1330, %v1343
      %v1345 = vcombine.low %v1289, %v1305
      %v1346 = vcombine.high %v1289, %v1305
      %v1348 = vunpack.c.l.s4 1934713408
      %v1349 = vunpack.c.0.s8 %v1348
      %v1350 = vlaneseq
      %v1351 = vshrl.u32 %v1350, 7
      %v1352 = vsub.s32 %v1349, %v1351
      %v1353 = vrot.slane %v1345, %v1352
      %v1355 = vunpack.c.l.s4 1934713408
      %v1356 = vunpack.c.0.s8 %v1355
      %v1357 = vlaneseq
      %v1358 = vshrl.u32 %v1357, 7
      %v1359 = vsub.s32 %v1356, %v1358
      %v1360 = vrot.slane %v1346, %v1359
      %v1361 = vcombine.low %v1296, %v1312
      %v1362 = vcombine.high %v1296, %v1312
      %v1364 = vunpack.c.l.s4 1934713408
      %v1365 = vunpack.c.0.s8 %v1364
      %v1366 = vlaneseq
      %v1367 = vshrl.u32 %v1366, 7
      %v1368 = vsub.s32 %v1365, %v1367
      %v1369 = vrot.slane %v1361, %v1368
      %v1371 = vunpack.c.l.s4 1934713408
      %v1372 = vunpack.c.0.s8 %v1371
      %v1373 = vlaneseq
      %v1374 = vshrl.u32 %v1373, 7
      %v1375 = vsub.s32 %v1372, %v1374
      %v1376 = vrot.slane %v1362, %v1375
      %v1377 = vcombine.low %v1321, %v1337
      %v1378 = vcombine.high %v1321, %v1337
      %v1380 = vunpack.c.l.s4 1934713408
      %v1381 = vunpack.c.0.s8 %v1380
      %v1382 = vlaneseq
      %v1383 = vshrl.u32 %v1382, 7
      %v1384 = vsub.s32 %v1381, %v1383
      %v1385 = vrot.slane %v1377, %v1384
      %v1387 = vunpack.c.l.s4 1934713408
      %v1388 = vunpack.c.0.s8 %v1387
      %v1389 = vlaneseq
      %v1390 = vshrl.u32 %v1389, 7
      %v1391 = vsub.s32 %v1388, %v1390
      %v1392 = vrot.slane %v1378, %v1391
      %v1393 = vcombine.low %v1328, %v1344
      %v1394 = vcombine.high %v1328, %v1344
      %v1396 = vunpack.c.l.s4 1934713408
      %v1397 = vunpack.c.0.s8 %v1396
      %v1398 = vlaneseq
      %v1399 = vshrl.u32 %v1398, 7
      %v1400 = vsub.s32 %v1397, %v1399
      %v1401 = vrot.slane %v1393, %v1400
      %v1403 = vunpack.c.l.s4 1934713408
      %v1404 = vunpack.c.0.s8 %v1403
      %v1405 = vlaneseq
      %v1406 = vshrl.u32 %v1405, 7
      %v1407 = vsub.s32 %v1404, %v1406
      %v1408 = vrot.slane %v1394, %v1407
      %v1409 = vcombine.low %v1353, %v1385
      %v1410 = vcombine.high %v1353, %v1385
      %v1411 = vcombine.low %v1360, %v1392
      %v1412 = vcombine.high %v1360, %v1392
      %v1413 = vcombine.low %v1369, %v1401
      %v1414 = vcombine.high %v1369, %v1401
      %v1415 = vcombine.low %v1376, %v1408
      %v1416 = vcombine.high %v1376, %v1408
      %1418 = vrot.lane.b32.xlu0 %v1274, 16
      %v1419 = vpop.permute.xlu0 %1418
      %1422 = vrot.lane.b32.xlu0 %v1275, 32
      %v1423 = vpop.permute.xlu0 %1422
      %1426 = vrot.lane.b32.xlu0 %v1276, 48
      %v1427 = vpop.permute.xlu0 %1426
      %1430 = vrot.lane.b32.xlu0 %v1277, 64
      %v1431 = vpop.permute.xlu0 %1430
      %1434 = vrot.lane.b32.xlu0 %v1278, 80
      %v1435 = vpop.permute.xlu0 %1434
      %1438 = vrot.lane.b32.xlu0 %v1279, 96
      %v1439 = vpop.permute.xlu0 %1438
      %1442 = vrot.lane.b32.xlu0 %v1280, 112
      %v1443 = vpop.permute.xlu0 %1442
      %1446 = vrot.lane.b32.xlu0 %v1410, 16
      %v1447 = vpop.permute.xlu0 %1446
      %1450 = vrot.lane.b32.xlu0 %v1411, 32
      %v1451 = vpop.permute.xlu0 %1450
      %1454 = vrot.lane.b32.xlu0 %v1412, 48
      %v1455 = vpop.permute.xlu0 %1454
      %1458 = vrot.lane.b32.xlu0 %v1413, 64
      %v1459 = vpop.permute.xlu0 %1458
      %1462 = vrot.lane.b32.xlu0 %v1414, 80
      %v1463 = vpop.permute.xlu0 %1462
      %1466 = vrot.lane.b32.xlu0 %v1415, 96
      %v1467 = vpop.permute.xlu0 %1466
      %1470 = vrot.lane.b32.xlu0 %v1416, 112
      %v1471 = vpop.permute.xlu0 %1470
      %v1473 = vsel %vm580, %v1273, %v1419
      %v1474 = vsel %vm596, %v1473, %v1423
      %vm1475 = vcmask 392192
      %v1476 = vsel %vm1475, %v1474, %v1427
      %vm1477 = vcmask 523264
      %v1478 = vsel %vm1477, %v1476, %v1431
      %vm1479 = vcmask 654336
      %v1480 = vsel %vm1479, %v1478, %v1435
      %vm1481 = vcmask 785408
      %v1482 = vsel %vm1481, %v1480, %v1439
      %vm1483 = vcmask 916480
      %v1484 = vsel %vm1483, %v1482, %v1443
      %v1485 = vsel %vm580, %v1409, %v1447
      %v1486 = vsel %vm596, %v1485, %v1451
      %v1487 = vsel %vm1475, %v1486, %v1455
      %v1488 = vsel %vm1477, %v1487, %v1459
      %v1489 = vsel %vm1479, %v1488, %v1463
      %v1490 = vsel %vm1481, %v1489, %v1467
      %v1491 = vsel %vm1483, %v1490, %v1471
      %1493 = vset.pattern.permute.xlu0 0
      %1494 = vperm.xlu0 %1493, %v173
      %v1495 = vpop.permute.xlu0 %1494
      %v1497 = vadd.f32 %v1484, %v1495
      %v1498 = vadd.f32 %v1491, %v1495
      %v1499 = vmul.f32 %v1497, 0.01
      %v1500 = vmul.f32 %v1498, 0.01
      %v1501 = vmax.f32 %v1497, %v1499
      %v1502 = vmax.f32 %v1498, %v1500
      %1503 = vst [vmem:[%s170] sm:$0xff] %v1501
      %1504 = vst [vmem:[%s170 + $0x8] sm:$0xff] %v1502
      %p1505 = scmp.lt.s32.totalorder %s14, 1
      %s1506 = scalar_select %p1505, %s14, 1
      %s1507 = smul.addr %s1506, 2
      %s1508 = smul.addr %s1507, 8
      %s1509 = scalar_lea.vmem %s3, %s1508
      // Predicated region
      $region33: #{leaky_relu_conv2d.1} parent=31 // pred_check
        %p1510 = pneg %p100
      $region34: #{leaky_relu_conv2d.1} parent=31 // pred_check_branch
        %1512 = sbr.rel (%p1510) target = $region36
      $region35: #{leaky_relu_conv2d.1} parent=31 // pred_region
        _
      $region36: #{leaky_relu_conv2d.1} parent=31 // pred_fallthru
        _
    $region32: #{leaky_relu_conv2d.1} parent=5 // pred_fallthru
      _
    %p1513 = scmp.le.s32.totalorder 2, %s9
    // Predicated region
    $region37: #{leaky_relu_conv2d.1} parent=5 // pred_check
      %p1514 = pneg %p1513
    $region38: #{leaky_relu_conv2d.1} parent=5 // pred_check_branch
      %1516 = sbr.rel (%p1514) target = $region40
    $region39: #{leaky_relu_conv2d.1} parent=5 // pred_region
      %s1517 = ssub.s32 %s9, 2
      // Predicated region
      $region41: #{leaky_relu_conv2d.1} parent=39 // pred_check
        %p1518 = pneg %p106
      $region42: #{leaky_relu_conv2d.1} parent=39 // pred_check_branch
        %1520 = sbr.rel (%p1518) target = $region44
      $region43: #{leaky_relu_conv2d.1} parent=39 // pred_region
        %p1521 = scmp.lt.s32.totalorder %s15, 1
        %s1522 = scalar_select %p1521, %s15, 1
        %s1523 = smul.addr %s1522, 2
        %s1524 = smul.addr %s1523, 8
        %s1525 = scalar_lea.vmem %s3, %s1524
      $region44: #{leaky_relu_conv2d.1} parent=39 // pred_fallthru
        _
    $region40: #{leaky_relu_conv2d.1} parent=5 // pred_fallthru
      _
  $region6: #{leaky_relu_conv2d.1} parent=0 // loop_footer
    %s13 = sadd.s32 1, %s9
  $region7: #{leaky_relu_conv2d.1} parent=0 // loop_footer_branch
    %8 = sbr.rel target = $region3
  $region8: #{leaky_relu_conv2d.1} parent=0 // loop_exit
    _

</llo_original>
